<compile_context>
chip_gen: v7x
topology: tpu7x:2x2x1
jax: 0.10.0
libtpu: 0.0.40
codegen_flags: <defaults>
</compile_context>

<pallas_src>
import jax
import jax.numpy as jnp
from jax.experimental import pallas as pl
from jax.experimental.pallas import tpu as pltpu

N_OBSERVATIONS = 8
N_ACTIONS = 4
HIDDEN = (128, 256, 256, 128)

# Launch/DMA bound, not MXU bound: big tiles amortize per-grid-step overhead.
# VMEM at TB=1024 stays < 4 MiB -> fits v5e/v6e/v7x with huge headroom.
MAX_BATCH_TILE = 1024


def _round_up(x, m):
    return (x + m - 1) // m * m


def _cdiv(a, b):
    return -(-a // b)


def _device_kind():
    try:
        return jax.devices()[0].device_kind.lower()
    except Exception:
        return ""


def _choose_batch_tile(batch):
    """Single tile up to 1024 rows, minimal padding for ragged B; on v7x force
    >= 2 tiles (for B >= 16) so the second TensorCore gets work."""
    n_tiles = _cdiv(batch, MAX_BATCH_TILE)
    if "v7" in _device_kind() and batch >= 16:
        n_tiles = max(n_tiles, 2)
    tb = _round_up(_cdiv(batch, n_tiles), 8)
    return min(tb, MAX_BATCH_TILE)


def _resident_spec(shape):
    """BlockSpec for a grid-invariant operand (constant index_map): one buffer."""
    try:
        return pl.BlockSpec(shape, lambda i: (0, 0), pipeline_mode=pl.Buffered(1))
    except TypeError:  # older jax without pipeline_mode kwarg
        return pl.BlockSpec(shape, lambda i: (0, 0))


def _build_kernel(n_layers, fan_ins, widths, offsets):
    """Fused MLP over one packed weight ref and one packed bias ref."""

    def kernel(x_ref, w_ref, b_ref, o_ref):
        h = x_ref[...].astype(jnp.bfloat16)              # (TB, n_obs) bf16
        for li in range(n_layers):
            off, width, fan_in = offsets[li], widths[li], fan_ins[li]
            w = w_ref[0:fan_in, off:off + width]         # static 8/128-aligned
            # bf16 x bf16 on the MXU, f32 accumulation.
            y = jnp.dot(h, w, preferred_element_type=jnp.float32)
            y = y + b_ref[:, off:off + width]            # (1, w) broadcast, f32
            if li < n_layers - 1:
                # ReLU on the f32 accumulator, store intermediate as bf16.
                h = jnp.maximum(y, 0.0).astype(jnp.bfloat16)
            else:
                o_ref[...] = y                           # lane-dense f32 store

    return kernel


def mlp_forward(x, params):
    """Forward pass of the DQN MLP.

    x:      (B, n_observations) f32
    params: list of (W, b) with W (in, out), b (1, out)
            (W is transposed relative to torch.nn.Linear.weight).
    """
    B, n_obs = x.shape
    n_layers = len(params)
    n_actions = params[-1][0].shape[1]
    n_out_pad = max(128, _round_up(n_actions, 128))

    fan_ins = tuple(int(w.shape[0]) for w, _ in params)
    widths = tuple(
        n_out_pad if li == n_layers - 1 else int(w.shape[1])
        for li, (w, _) in enumerate(params))
    offsets = tuple(int(sum(widths[:li])) for li in range(n_layers))
    max_fan_in = _round_up(max(fan_ins), 8)

    # --- pack all weights into one bf16 array, all biases into one f32 array -
    w_blocks, b_blocks = [], []
    for li, (w, b) in enumerate(params):
        w = w.astype(jnp.bfloat16)
        b = b.reshape(1, -1).astype(jnp.float32)
        if w.shape[1] != widths[li]:                     # lane-pad last layer
            w = jnp.pad(w, ((0, 0), (0, widths[li] - w.shape[1])))
            b = jnp.pad(b, ((0, 0), (0, widths[li] - b.shape[1])))
        w = jnp.pad(w, ((0, max_fan_in - w.shape[0]), (0, 0)))
        w_blocks.append(w)
        b_blocks.append(b)
    w_all = jnp.concatenate(w_blocks, axis=1)            # (256, 896) bf16, 1 DMA
    b_all = jnp.concatenate(b_blocks, axis=1)            # (1, 896)  f32,  1 DMA

    # --- batch tiling ---------------------------------------------------------
    tb = _choose_batch_tile(B)
    b_pad = tb * _cdiv(B, tb)
    x = x.astype(jnp.float32)
    if b_pad != B:
        x = jnp.pad(x, ((0, b_pad - B), (0, 0)))
    grid = (b_pad // tb,)

    kernel = _build_kernel(n_layers, fan_ins, widths, offsets)

    in_specs = [
        pl.BlockSpec((tb, n_obs), lambda i: (i, 0)),     # activations move
        _resident_spec(w_all.shape),                     # weights resident
        _resident_spec(b_all.shape),                     # biases resident
    ]
    out_spec = pl.BlockSpec((tb, n_out_pad), lambda i: (i, 0))

    out = pl.pallas_call(
        kernel,
        out_shape=jax.ShapeDtypeStruct((b_pad, n_out_pad), jnp.float32),
        grid=grid,
        in_specs=in_specs,
        out_specs=out_spec,
        compiler_params=pltpu.CompilerParams(
            dimension_semantics=("parallel",)),
    )(x, w_all, b_all)

    return out[:B, :n_actions]


def init_params(key, n_observations, n_actions):
    """Deterministic init mimicking torch.nn.Linear default (uniform +-1/sqrt(fan_in))."""
    dims = (n_observations,) + HIDDEN + (n_actions,)
    params = []
    for i in range(len(dims) - 1):
        fan_in, fan_out = dims[i], dims[i + 1]
        key, kw, kb = jax.random.split(key, 3)
        bound = 1.0 / (fan_in ** 0.5)
        w = jax.random.uniform(kw, (fan_in, fan_out), jnp.float32, -bound, bound)
        b = jax.random.uniform(kb, (1, fan_out), jnp.float32, -bound, bound)
        params.append((w, b))
    return params


def reference_forward(x, params):
    """Pure-JAX reference matching the kernel's precision recipe
    (bf16 matmuls + bf16 intermediates, f32 accumulation / bias / ReLU)."""
    h = x.astype(jnp.bfloat16)
    n = len(params)
    for i, (w, b) in enumerate(params):
        y = jnp.dot(h, w.astype(jnp.bfloat16),
                    preferred_element_type=jnp.float32) + b.astype(jnp.float32)
        if i < n - 1:
            h = jnp.maximum(y, 0.0).astype(jnp.bfloat16)
        else:
            return y


if __name__ == "__main__":
    key = jax.random.PRNGKey(0)
    key, kx = jax.random.split(key)
    params = init_params(key, N_OBSERVATIONS, N_ACTIONS)

    # Small inference-style batch (DQN action selection): single tile.
    x_small = jax.random.normal(kx, (8, N_OBSERVATIONS), dtype=jnp.float32)
    out_small = jax.block_until_ready(mlp_forward(x_small, params))
    ref_small = reference_forward(x_small, params)
    assert out_small.shape == (8, N_ACTIONS)
    assert jnp.allclose(out_small, ref_small, atol=2e-2, rtol=2e-2), "small-batch mismatch"

    # Replay-buffer-style batch exercising tiling / padding (and 2 tiles on v7x).
    key, kx2 = jax.random.split(key)
    x_big = jax.random.normal(kx2, (300, N_OBSERVATIONS), dtype=jnp.float32)
    out_big = jax.block_until_ready(mlp_forward(x_big, params))
    ref_big = reference_forward(x_big, params)
    assert out_big.shape == (300, N_ACTIONS)
    assert jnp.allclose(out_big, ref_big, atol=2e-2, rtol=2e-2), "batched mismatch"

    print("KERNEL_OK")
</pallas_src>

<mosaic_0001>
module attributes {stable_mosaic.version = 11 : i64} {
  func.func @kernel(%arg0: i32, %arg1: memref<8x8xf32, #tpu.memory_space<vmem>>, %arg2: memref<256x896xbf16, #tpu.memory_space<vmem>>, %arg3: memref<1x896xf32, #tpu.memory_space<vmem>>, %arg4: memref<8x128xf32, #tpu.memory_space<vmem>>) attributes {dimension_semantics = [#tpu.dimension_semantics<parallel>], iteration_bounds = array<i64: 1>, scalar_prefetch = 0 : i64, scratch_operands = 0 : i64, tpu.core_type = #tpu.core_type<tc>, window_params = [{transform_indices = @transform_0, window_bounds = array<i64: 8, 8>}, {pipeline_mode = #tpu.pipeline_mode<synchronous>, transform_indices = @transform_1, window_bounds = array<i64: 256, 896>}, {pipeline_mode = #tpu.pipeline_mode<synchronous>, transform_indices = @transform_2, window_bounds = array<i64: 1, 896>}, {transform_indices = @transform_3, window_bounds = array<i64: 8, 128>}]} {
    %c0 = arith.constant 0 : index
    %c0_0 = arith.constant 0 : index
    %0 = vector.load %arg1[%c0, %c0_0] : memref<8x8xf32, #tpu.memory_space<vmem>>, vector<8x8xf32>
    %1 = arith.truncf %0 : vector<8x8xf32> to vector<8x8xbf16>
    %c0_1 = arith.constant 0 : index
    %c0_2 = arith.constant 0 : index
    %2 = vector.load %arg2[%c0_1, %c0_2] : memref<256x896xbf16, #tpu.memory_space<vmem>>, vector<8x128xbf16>
    %cst = arith.constant dense<0.000000e+00> : vector<8x128xf32>
    %3 = tpu.matmul %1, %2, %cst {dimension_numbers = #tpu.dot_dimension_numbers<[1], [0], [0], [1], [0, 0, 1, 1], [], []>} : vector<8x8xbf16>, vector<8x128xbf16>, vector<8x128xf32> -> vector<8x128xf32>
    %c0_3 = arith.constant 0 : index
    %c0_4 = arith.constant 0 : index
    %4 = vector.load %arg3[%c0_3, %c0_4] : memref<1x896xf32, #tpu.memory_space<vmem>>, vector<1x128xf32>
    %5 = vector.broadcast %4 : vector<1x128xf32> to vector<8x128xf32>
    %6 = arith.addf %3, %5 : vector<8x128xf32>
    %cst_5 = arith.constant 0.000000e+00 : f32
    %7 = vector.broadcast %cst_5 : f32 to vector<8x128xf32>
    %8 = arith.maximumf %6, %7 : vector<8x128xf32>
    %9 = arith.truncf %8 : vector<8x128xf32> to vector<8x128xbf16>
    %c0_6 = arith.constant 0 : index
    %c128 = arith.constant 128 : index
    %10 = vector.load %arg2[%c0_6, %c128] : memref<256x896xbf16, #tpu.memory_space<vmem>>, vector<128x256xbf16>
    %cst_7 = arith.constant dense<0.000000e+00> : vector<8x256xf32>
    %11 = tpu.matmul %9, %10, %cst_7 {dimension_numbers = #tpu.dot_dimension_numbers<[1], [0], [0], [1], [0, 0, 1, 1], [], []>} : vector<8x128xbf16>, vector<128x256xbf16>, vector<8x256xf32> -> vector<8x256xf32>
    %c0_8 = arith.constant 0 : index
    %c128_9 = arith.constant 128 : index
    %12 = vector.load %arg3[%c0_8, %c128_9] : memref<1x896xf32, #tpu.memory_space<vmem>>, vector<1x256xf32>
    %13 = vector.broadcast %12 : vector<1x256xf32> to vector<8x256xf32>
    %14 = arith.addf %11, %13 : vector<8x256xf32>
    %cst_10 = arith.constant 0.000000e+00 : f32
    %15 = vector.broadcast %cst_10 : f32 to vector<8x256xf32>
    %16 = arith.maximumf %14, %15 : vector<8x256xf32>
    %17 = arith.truncf %16 : vector<8x256xf32> to vector<8x256xbf16>
    %c0_11 = arith.constant 0 : index
    %c384 = arith.constant 384 : index
    %18 = vector.load %arg2[%c0_11, %c384] : memref<256x896xbf16, #tpu.memory_space<vmem>>, vector<256x256xbf16>
    %cst_12 = arith.constant dense<0.000000e+00> : vector<8x256xf32>
    %19 = tpu.matmul %17, %18, %cst_12 {dimension_numbers = #tpu.dot_dimension_numbers<[1], [0], [0], [1], [0, 0, 1, 1], [], []>} : vector<8x256xbf16>, vector<256x256xbf16>, vector<8x256xf32> -> vector<8x256xf32>
    %c0_13 = arith.constant 0 : index
    %c384_14 = arith.constant 384 : index
    %20 = vector.load %arg3[%c0_13, %c384_14] : memref<1x896xf32, #tpu.memory_space<vmem>>, vector<1x256xf32>
    %21 = vector.broadcast %20 : vector<1x256xf32> to vector<8x256xf32>
    %22 = arith.addf %19, %21 : vector<8x256xf32>
    %cst_15 = arith.constant 0.000000e+00 : f32
    %23 = vector.broadcast %cst_15 : f32 to vector<8x256xf32>
    %24 = arith.maximumf %22, %23 : vector<8x256xf32>
    %25 = arith.truncf %24 : vector<8x256xf32> to vector<8x256xbf16>
    %c0_16 = arith.constant 0 : index
    %c640 = arith.constant 640 : index
    %26 = vector.load %arg2[%c0_16, %c640] : memref<256x896xbf16, #tpu.memory_space<vmem>>, vector<256x128xbf16>
    %cst_17 = arith.constant dense<0.000000e+00> : vector<8x128xf32>
    %27 = tpu.matmul %25, %26, %cst_17 {dimension_numbers = #tpu.dot_dimension_numbers<[1], [0], [0], [1], [0, 0, 1, 1], [], []>} : vector<8x256xbf16>, vector<256x128xbf16>, vector<8x128xf32> -> vector<8x128xf32>
    %c0_18 = arith.constant 0 : index
    %c640_19 = arith.constant 640 : index
    %28 = vector.load %arg3[%c0_18, %c640_19] : memref<1x896xf32, #tpu.memory_space<vmem>>, vector<1x128xf32>
    %29 = vector.broadcast %28 : vector<1x128xf32> to vector<8x128xf32>
    %30 = arith.addf %27, %29 : vector<8x128xf32>
    %cst_20 = arith.constant 0.000000e+00 : f32
    %31 = vector.broadcast %cst_20 : f32 to vector<8x128xf32>
    %32 = arith.maximumf %30, %31 : vector<8x128xf32>
    %33 = arith.truncf %32 : vector<8x128xf32> to vector<8x128xbf16>
    %c0_21 = arith.constant 0 : index
    %c768 = arith.constant 768 : index
    %34 = vector.load %arg2[%c0_21, %c768] : memref<256x896xbf16, #tpu.memory_space<vmem>>, vector<128x128xbf16>
    %cst_22 = arith.constant dense<0.000000e+00> : vector<8x128xf32>
    %35 = tpu.matmul %33, %34, %cst_22 {dimension_numbers = #tpu.dot_dimension_numbers<[1], [0], [0], [1], [0, 0, 1, 1], [], []>} : vector<8x128xbf16>, vector<128x128xbf16>, vector<8x128xf32> -> vector<8x128xf32>
    %c0_23 = arith.constant 0 : index
    %c768_24 = arith.constant 768 : index
    %36 = vector.load %arg3[%c0_23, %c768_24] : memref<1x896xf32, #tpu.memory_space<vmem>>, vector<1x128xf32>
    %37 = vector.broadcast %36 : vector<1x128xf32> to vector<8x128xf32>
    %38 = arith.addf %35, %37 : vector<8x128xf32>
    %c0_25 = arith.constant 0 : index
    %c0_26 = arith.constant 0 : index
    %39 = vector.load %arg4[%c0_25, %c0_26] : memref<8x128xf32, #tpu.memory_space<vmem>>, vector<8x128xf32>
    tpu.vector_store %arg4[%c0_25, %c0_26], %38 {strides = array<i32>} : memref<8x128xf32, #tpu.memory_space<vmem>>, vector<8x128xf32>,
    return
  }
  func.func @transform_0(%arg0: i32) -> (i32, i32) {
    %c0_i32 = arith.constant 0 : i32
    %c0_i32_0 = arith.constant 0 : i32
    return %arg0, %c0_i32 : i32, i32
  }
  func.func @transform_1(%arg0: i32) -> (i32, i32) {
    %c0_i32 = arith.constant 0 : i32
    %c0_i32_0 = arith.constant 0 : i32
    %c0_i32_1 = arith.constant 0 : i32
    return %c0_i32, %c0_i32_0 : i32, i32
  }
  func.func @transform_2(%arg0: i32) -> (i32, i32) {
    %c0_i32 = arith.constant 0 : i32
    %c0_i32_0 = arith.constant 0 : i32
    %c0_i32_1 = arith.constant 0 : i32
    return %c0_i32, %c0_i32_0 : i32, i32
  }
  func.func @transform_3(%arg0: i32) -> (i32, i32) {
    %c0_i32 = arith.constant 0 : i32
    %c0_i32_0 = arith.constant 0 : i32
    return %arg0, %c0_i32 : i32, i32
  }
}

</mosaic_0001>

<llo_original>
// kernel: tpu_custom_call.1
$region0: #{tpu_custom_call.1}
  #allocation0 [shape = 'u32[]', space=smem, size = 0x4, offset = 0x4, fixed_abs, tag = 'smem constant byte address 0x4 - core index']
  #allocation1 [shape = 'u32[144,128]{1,0:T(1,128)}', space=vmem, size = 0x12000, scoped, tag = 'internal scratch']
  %s0 = inlined_call_operand.hbm [shape: f32[8,8], index: 0, kind: input, shape index: {}]
  %s1 = inlined_call_operand.hbm [shape: bf16[256,896], index: 1, kind: input, shape index: {}]
  %s2 = inlined_call_operand.vmem [shape: f32[1,896], index: 2, kind: input, shape index: {}]
  %s3 = inlined_call_operand.hbm [shape: f32[8,128], index: 3, kind: output, shape index: {}]
  %s4 = sld [smem:[#allocation0]]
  $region30: #{tpu_custom_call.1} parent=0
    _
  %s6 = ssub.s32 1, %s4
  %s7 = scalar_select 0, %s6, %s4
  $region1: #{tpu_custom_call.1} parent=0
    #allocation2 [shape = 'u8[4096]{0}', space=vmem, size = 0x1000, scoped, tag = 'input window, operand 0, single buffered']
    #allocation3 [shape = 's32[1]{0}', space=sflag, size = 0x4, scoped, tag = 'scoped memory for tpu_custom_call.1']
    #allocation4 [shape = 's32[1]{0}', space=sflag, size = 0x4, scoped, tag = 'scoped memory for tpu_custom_call.1']
    #allocation5 [shape = 'u8[458752]{0}', space=vmem, size = 0x70000, scoped, tag = 'input window, operand 1, single buffered']
    #allocation6 [shape = 's32[1]{0}', space=sflag, size = 0x4, scoped, tag = 'scoped memory for tpu_custom_call.1']
    #allocation7 [shape = 'u8[4096]{0}', space=vmem, size = 0x1000, scoped, tag = 'output window, operand 0, single buffered']
    %8 = vsyncpa [#allocation3], 0
    %9 = vsyncpa [#allocation6], 0
    %10 = vsyncpa [#allocation4], 0
    // Predicated region
    $region2: #{tpu_custom_call.1} parent=1 // pred_check
      _
    $region3: #{tpu_custom_call.1} parent=1 // pred_check_branch
      %12 = sbr.rel (0) target = $region5
    $region4: #{tpu_custom_call.1} parent=1 // pred_region
      %s14 = ssub.s32 128, 128
      %15 = vsyncadd [#allocation3], %s14
      %s17 = sshll.u32 [#allocation2], 4
      %s18 = int_to_ptr.vmem [resolvable:$true] %s17
      %20 = dma.hbm_to_vmem [thread:$0]  %s0, 128, %s18, [#allocation3]
    $region5: #{tpu_custom_call.1} parent=1 // pred_fallthru
      _
    // Predicated region
    $region6: #{tpu_custom_call.1} parent=1 // pred_check
      _
    $region7: #{tpu_custom_call.1} parent=1 // pred_check_branch
      %22 = sbr.rel (0) target = $region9
    $region8: #{tpu_custom_call.1} parent=1 // pred_region
      %s24 = ssub.s32 14336, 14336
      %25 = vsyncadd [#allocation6], %s24
      %s26 = sshll.u32 [#allocation5], 4
      %s27 = int_to_ptr.vmem [resolvable:$true] %s26
      %32 = dma.hbm_to_vmem [thread:$0]  %s1, 14336, %s27, [#allocation6], 448, 448, 28
    $region9: #{tpu_custom_call.1} parent=1 // pred_fallthru
      _
    // Predicated region
    $region10: #{tpu_custom_call.1} parent=1 // pred_check
      _
    $region11: #{tpu_custom_call.1} parent=1 // pred_check_branch
      %34 = sbr.rel (0) target = $region13
    $region12: #{tpu_custom_call.1} parent=1 // pred_region
      _
    $region13: #{tpu_custom_call.1} parent=1 // pred_fallthru
      _
    // Predicated region
    $region14: #{tpu_custom_call.1} parent=1 // pred_check
      _
    $region15: #{tpu_custom_call.1} parent=1 // pred_check_branch
      %36 = sbr.rel (0) target = $region17
    $region16: #{tpu_custom_call.1} parent=1 // pred_region
      %37 = dma.done [#allocation3], 128
    $region17: #{tpu_custom_call.1} parent=1 // pred_fallthru
      _
    // Predicated region
    $region18: #{tpu_custom_call.1} parent=1 // pred_check
      _
    $region19: #{tpu_custom_call.1} parent=1 // pred_check_branch
      %39 = sbr.rel (0) target = $region21
    $region20: #{tpu_custom_call.1} parent=1 // pred_region
      %40 = dma.done [#allocation6], 14336
    $region21: #{tpu_custom_call.1} parent=1 // pred_fallthru
      _
    %v42 = vld [vmem:[#allocation2] sm:$0xff]
    %v43 = vpack.c.bf16 %v42, %v42
    %v44 = vld [vmem:[#allocation5] sm:$0xf]
    %v45 = vld [vmem:[%s2] sm:$0x1]
    %v47 = vlaneseq
    %v48 = vshrl.u32 %v47, 7
    %v49 = vsub.s32 0, %v48
    %v50 = vrot.slane %v45, %v49
    %vm52 = vcmask 64512
    %v54 = vsel %vm52, %v43, 0
    %vm56 = vcmask 1043456
    %v58 = vsel %vm56, %v44, 0
    %60 = vmatprep.subr.bf16.mxu0 0
    %61 = vmatpush1.bf16.msra.mxu0 %v58
    %62 = vmatprep.subr.bf16.mxu0 0
    %63 = vmatpush1.bf16.msra.mxu0 0
    %64 = vmatprep.subr.bf16.mxu0 0
    %65 = vmatpush1.bf16.msra.mxu0 0
    %66 = vmatprep.subr.bf16.mxu0 0
    %67 = vmatpush1.bf16.msra.mxu0 0
    %68 = vmatprep.subr.bf16.mxu0 0
    %69 = vmatpush1.bf16.msra.mxu0 0
    %70 = vmatprep.subr.bf16.mxu0 0
    %71 = vmatpush1.bf16.msra.mxu0 0
    %72 = vmatprep.subr.bf16.mxu0 0
    %73 = vmatpush1.bf16.msra.mxu0 0
    %74 = vmatprep.subr.bf16.mxu0 0
    %75 = vmatpush1.bf16.msra.mxu0 0
    %76 = vmatprep.subr.bf16.mxu0 0
    %77 = vmatpush1.bf16.msra.mxu0 0
    %78 = vmatprep.subr.bf16.mxu0 0
    %79 = vmatpush1.bf16.msra.mxu0 0
    %80 = vmatprep.subr.bf16.mxu0 0
    %81 = vmatpush1.bf16.msra.mxu0 0
    %82 = vmatprep.subr.bf16.mxu0 0
    %83 = vmatpush1.bf16.msra.mxu0 0
    %84 = vmatprep.subr.bf16.mxu0 0
    %85 = vmatpush1.bf16.msra.mxu0 0
    %86 = vmatprep.subr.bf16.mxu0 0
    %87 = vmatpush1.bf16.msra.mxu0 0
    %88 = vmatprep.subr.bf16.mxu0 0
    %89 = vmatpush1.bf16.msra.mxu0 0
    %90 = vmatprep.subr.bf16.mxu0 0
    %91 = vmatpush1.bf16.msra.mxu0 0
    %92 = vmatprep.mubr.bf16.mxu0 0
    %93 = vmatmul.mubr.bf16.gmra.mrb[0].mxu0 %v54
    %v94 = vpop.f32.mrb[0].mxu0
    %v95 = vadd.f32 %v50, %v94
    %v96 = vpop.f32.mrb[0].mxu0
    %v97 = vpop.f32.mrb[0].mxu0
    %v98 = vpop.f32.mrb[0].mxu0
    %99 = vdwg.mxu0
    %v100 = vmax.f32 %v95, 0.0
    %v101 = vpack.c.bf16 %v100, %v100
    %v102 = vld [vmem:[#allocation5 + $0x4] sm:$0xff]
    %v103 = vld [vmem:[#allocation5 + $0x20] sm:$0xff]
    %v104 = vld [vmem:[#allocation5 + $0x3c] sm:$0xff]
    %v105 = vld [vmem:[#allocation5 + $0x58] sm:$0xff]
    %v106 = vld [vmem:[#allocation5 + $0x74] sm:$0xff]
    %v107 = vld [vmem:[#allocation5 + $0x90] sm:$0xff]
    %v108 = vld [vmem:[#allocation5 + $0xac] sm:$0xff]
    %v109 = vld [vmem:[#allocation5 + $0xc8] sm:$0xff]
    %v110 = vld [vmem:[#allocation5 + $0xe4] sm:$0xff]
    %v111 = vld [vmem:[#allocation5 + $0x100] sm:$0xff]
    %v112 = vld [vmem:[#allocation5 + $0x11c] sm:$0xff]
    %v113 = vld [vmem:[#allocation5 + $0x138] sm:$0xff]
    %v114 = vld [vmem:[#allocation5 + $0x154] sm:$0xff]
    %v115 = vld [vmem:[#allocation5 + $0x170] sm:$0xff]
    %v116 = vld [vmem:[#allocation5 + $0x18c] sm:$0xff]
    %v117 = vld [vmem:[#allocation5 + $0x1a8] sm:$0xff]
    %v118 = vld [vmem:[%s2 + $0x1] sm:$0x3]
    %v120 = vlaneseq
    %v121 = vshrl.u32 %v120, 7
    %v122 = vsub.s32 0, %v121
    %v123 = vrot.slane %v118, %v122
    %v124 = vlaneseq
    %v125 = vshrl.u32 %v124, 7
    %v126 = vsub.s32 1, %v125
    %v127 = vrot.slane %v118, %v126
    %v146 = vunpack.c.l.b16 %v102
    %v147 = vunpack.c.h.b16 %v102
    %v148 = vunpack.c.l.b16 %v103
    %v149 = vunpack.c.h.b16 %v103
    %v150 = vunpack.c.l.b16 %v104
    %v151 = vunpack.c.h.b16 %v104
    %v152 = vunpack.c.l.b16 %v105
    %v153 = vunpack.c.h.b16 %v105
    %v154 = vunpack.c.l.b16 %v106
    %v155 = vunpack.c.h.b16 %v106
    %v156 = vunpack.c.l.b16 %v107
    %v157 = vunpack.c.h.b16 %v107
    %v158 = vunpack.c.l.b16 %v108
    %v159 = vunpack.c.h.b16 %v108
    %v160 = vunpack.c.l.b16 %v109
    %v161 = vunpack.c.h.b16 %v109
    %v162 = vunpack.c.l.b16 %v110
    %v163 = vunpack.c.h.b16 %v110
    %v164 = vunpack.c.l.b16 %v111
    %v165 = vunpack.c.h.b16 %v111
    %v166 = vunpack.c.l.b16 %v112
    %v167 = vunpack.c.h.b16 %v112
    %v168 = vunpack.c.l.b16 %v113
    %v169 = vunpack.c.h.b16 %v113
    %v170 = vunpack.c.l.b16 %v114
    %v171 = vunpack.c.h.b16 %v114
    %v172 = vunpack.c.l.b16 %v115
    %v173 = vunpack.c.h.b16 %v115
    %v174 = vunpack.c.l.b16 %v116
    %v175 = vunpack.c.h.b16 %v116
    %v176 = vunpack.c.l.b16 %v117
    %v177 = vunpack.c.h.b16 %v117
    %v178 = vpack.c.b16 %v148, %v146
    %v179 = vpack.c.b16 %v149, %v147
    %v180 = vpack.c.b16 %v152, %v150
    %v181 = vpack.c.b16 %v153, %v151
    %v182 = vpack.c.b16 %v156, %v154
    %v183 = vpack.c.b16 %v157, %v155
    %v184 = vpack.c.b16 %v160, %v158
    %v185 = vpack.c.b16 %v161, %v159
    %v186 = vpack.c.b16 %v164, %v162
    %v187 = vpack.c.b16 %v165, %v163
    %v188 = vpack.c.b16 %v168, %v166
    %v189 = vpack.c.b16 %v169, %v167
    %v190 = vpack.c.b16 %v172, %v170
    %v191 = vpack.c.b16 %v173, %v171
    %v192 = vpack.c.b16 %v176, %v174
    %v193 = vpack.c.b16 %v177, %v175
    %210 = vmatprep.subr.bf16.mxu0 %v179
    %211 = vmatpush1.bf16.msra.mxu0 %v178
    %212 = vmatprep.subr.bf16.mxu0 %v181
    %213 = vmatpush1.bf16.msra.mxu0 %v180
    %214 = vmatprep.subr.bf16.mxu0 %v183
    %215 = vmatpush1.bf16.msra.mxu0 %v182
    %216 = vmatprep.subr.bf16.mxu0 %v185
    %217 = vmatpush1.bf16.msra.mxu0 %v184
    %218 = vmatprep.subr.bf16.mxu0 %v187
    %219 = vmatpush1.bf16.msra.mxu0 %v186
    %220 = vmatprep.subr.bf16.mxu0 %v189
    %221 = vmatpush1.bf16.msra.mxu0 %v188
    %222 = vmatprep.subr.bf16.mxu0 %v191
    %223 = vmatpush1.bf16.msra.mxu0 %v190
    %224 = vmatprep.subr.bf16.mxu0 %v193
    %225 = vmatpush1.bf16.msra.mxu0 %v192
    %226 = vmatprep.subr.bf16.mxu0 0
    %227 = vmatpush1.bf16.msra.mxu0 0
    %228 = vmatprep.subr.bf16.mxu0 0
    %229 = vmatpush1.bf16.msra.mxu0 0
    %230 = vmatprep.subr.bf16.mxu0 0
    %231 = vmatpush1.bf16.msra.mxu0 0
    %232 = vmatprep.subr.bf16.mxu0 0
    %233 = vmatpush1.bf16.msra.mxu0 0
    %234 = vmatprep.subr.bf16.mxu0 0
    %235 = vmatpush1.bf16.msra.mxu0 0
    %236 = vmatprep.subr.bf16.mxu0 0
    %237 = vmatpush1.bf16.msra.mxu0 0
    %238 = vmatprep.subr.bf16.mxu0 0
    %239 = vmatpush1.bf16.msra.mxu0 0
    %240 = vmatprep.subr.bf16.mxu0 0
    %241 = vmatpush1.bf16.msra.mxu0 0
    %242 = vmatprep.mubr.bf16.mxu0 0
    %243 = vmatmul.mubr.bf16.gmra.mrb[0].mxu0 %v101
    %v244 = vpop.f32.mrb[0].mxu0
    %v245 = vadd.f32 %v123, %v244
    %v246 = vpop.f32.mrb[0].mxu0
    %v247 = vadd.f32 %v127, %v246
    %v248 = vpop.f32.mrb[0].mxu0
    %v249 = vpop.f32.mrb[0].mxu0
    %250 = vdwg.mxu0
    %v251 = vmax.f32 %v245, 0.0
    %v252 = vmax.f32 %v247, 0.0
    %v253 = vpack.c.bf16 %v251, %v251
    %v254 = vpack.c.bf16 %v252, %v252
    %v255 = vld [vmem:[#allocation5 + $0xc] sm:$0xff]
    %v256 = vld [vmem:[#allocation5 + $0x28] sm:$0xff]
    %v257 = vld [vmem:[#allocation5 + $0x44] sm:$0xff]
    %v258 = vld [vmem:[#allocation5 + $0x60] sm:$0xff]
    %v259 = vld [vmem:[#allocation5 + $0x7c] sm:$0xff]
    %v260 = vld [vmem:[#allocation5 + $0x98] sm:$0xff]
    %v261 = vld [vmem:[#allocation5 + $0xb4] sm:$0xff]
    %v262 = vld [vmem:[#allocation5 + $0xd0] sm:$0xff]
    %v263 = vld [vmem:[#allocation5 + $0xec] sm:$0xff]
    %v264 = vld [vmem:[#allocation5 + $0x108] sm:$0xff]
    %v265 = vld [vmem:[#allocation5 + $0x124] sm:$0xff]
    %v266 = vld [vmem:[#allocation5 + $0x140] sm:$0xff]
    %v267 = vld [vmem:[#allocation5 + $0x15c] sm:$0xff]
    %v268 = vld [vmem:[#allocation5 + $0x178] sm:$0xff]
    %v269 = vld [vmem:[#allocation5 + $0x194] sm:$0xff]
    %v270 = vld [vmem:[#allocation5 + $0x1b0] sm:$0xff]
    %v271 = vld [vmem:[#allocation5 + $0x1cc] sm:$0xff]
    %v272 = vld [vmem:[#allocation5 + $0x1e8] sm:$0xff]
    %v273 = vld [vmem:[#allocation5 + $0x204] sm:$0xff]
    %v274 = vld [vmem:[#allocation5 + $0x220] sm:$0xff]
    %v275 = vld [vmem:[#allocation5 + $0x23c] sm:$0xff]
    %v276 = vld [vmem:[#allocation5 + $0x258] sm:$0xff]
    %v277 = vld [vmem:[#allocation5 + $0x274] sm:$0xff]
    %v278 = vld [vmem:[#allocation5 + $0x290] sm:$0xff]
    %v279 = vld [vmem:[#allocation5 + $0x2ac] sm:$0xff]
    %v280 = vld [vmem:[#allocation5 + $0x2c8] sm:$0xff]
    %v281 = vld [vmem:[#allocation5 + $0x2e4] sm:$0xff]
    %v282 = vld [vmem:[#allocation5 + $0x300] sm:$0xff]
    %v283 = vld [vmem:[#allocation5 + $0x31c] sm:$0xff]
    %v284 = vld [vmem:[#allocation5 + $0x338] sm:$0xff]
    %v285 = vld [vmem:[#allocation5 + $0x354] sm:$0xff]
    %v286 = vld [vmem:[#allocation5 + $0x370] sm:$0xff]
    %v287 = vld [vmem:[%s2 + $0x3] sm:$0x3]
    %v289 = vlaneseq
    %v290 = vshrl.u32 %v289, 7
    %v291 = vsub.s32 0, %v290
    %v292 = vrot.slane %v287, %v291
    %v293 = vlaneseq
    %v294 = vshrl.u32 %v293, 7
    %v295 = vsub.s32 1, %v294
    %v296 = vrot.slane %v287, %v295
    %v331 = vunpack.c.l.b16 %v255
    %v332 = vunpack.c.h.b16 %v255
    %v333 = vunpack.c.l.b16 %v256
    %v334 = vunpack.c.h.b16 %v256
    %v335 = vunpack.c.l.b16 %v257
    %v336 = vunpack.c.h.b16 %v257
    %v337 = vunpack.c.l.b16 %v258
    %v338 = vunpack.c.h.b16 %v258
    %v339 = vunpack.c.l.b16 %v259
    %v340 = vunpack.c.h.b16 %v259
    %v341 = vunpack.c.l.b16 %v260
    %v342 = vunpack.c.h.b16 %v260
    %v343 = vunpack.c.l.b16 %v261
    %v344 = vunpack.c.h.b16 %v261
    %v345 = vunpack.c.l.b16 %v262
    %v346 = vunpack.c.h.b16 %v262
    %v347 = vunpack.c.l.b16 %v263
    %v348 = vunpack.c.h.b16 %v263
    %v349 = vunpack.c.l.b16 %v264
    %v350 = vunpack.c.h.b16 %v264
    %v351 = vunpack.c.l.b16 %v265
    %v352 = vunpack.c.h.b16 %v265
    %v353 = vunpack.c.l.b16 %v266
    %v354 = vunpack.c.h.b16 %v266
    %v355 = vunpack.c.l.b16 %v267
    %v356 = vunpack.c.h.b16 %v267
    %v357 = vunpack.c.l.b16 %v268
    %v358 = vunpack.c.h.b16 %v268
    %v359 = vunpack.c.l.b16 %v269
    %v360 = vunpack.c.h.b16 %v269
    %v361 = vunpack.c.l.b16 %v270
    %v362 = vunpack.c.h.b16 %v270
    %v363 = vunpack.c.l.b16 %v271
    %v364 = vunpack.c.h.b16 %v271
    %v365 = vunpack.c.l.b16 %v272
    %v366 = vunpack.c.h.b16 %v272
    %v367 = vunpack.c.l.b16 %v273
    %v368 = vunpack.c.h.b16 %v273
    %v369 = vunpack.c.l.b16 %v274
    %v370 = vunpack.c.h.b16 %v274
    %v371 = vunpack.c.l.b16 %v275
    %v372 = vunpack.c.h.b16 %v275
    %v373 = vunpack.c.l.b16 %v276
    %v374 = vunpack.c.h.b16 %v276
    %v375 = vunpack.c.l.b16 %v277
    %v376 = vunpack.c.h.b16 %v277
    %v377 = vunpack.c.l.b16 %v278
    %v378 = vunpack.c.h.b16 %v278
    %v379 = vunpack.c.l.b16 %v279
    %v380 = vunpack.c.h.b16 %v279
    %v381 = vunpack.c.l.b16 %v280
    %v382 = vunpack.c.h.b16 %v280
    %v383 = vunpack.c.l.b16 %v281
    %v384 = vunpack.c.h.b16 %v281
    %v385 = vunpack.c.l.b16 %v282
    %v386 = vunpack.c.h.b16 %v282
    %v387 = vunpack.c.l.b16 %v283
    %v388 = vunpack.c.h.b16 %v283
    %v389 = vunpack.c.l.b16 %v284
    %v390 = vunpack.c.h.b16 %v284
    %v391 = vunpack.c.l.b16 %v285
    %v392 = vunpack.c.h.b16 %v285
    %v393 = vunpack.c.l.b16 %v286
    %v394 = vunpack.c.h.b16 %v286
    %v395 = vpack.c.b16 %v333, %v331
    %v396 = vpack.c.b16 %v334, %v332
    %v397 = vpack.c.b16 %v337, %v335
    %v398 = vpack.c.b16 %v338, %v336
    %v399 = vpack.c.b16 %v341, %v339
    %v400 = vpack.c.b16 %v342, %v340
    %v401 = vpack.c.b16 %v345, %v343
    %v402 = vpack.c.b16 %v346, %v344
    %v403 = vpack.c.b16 %v349, %v347
    %v404 = vpack.c.b16 %v350, %v348
    %v405 = vpack.c.b16 %v353, %v351
    %v406 = vpack.c.b16 %v354, %v352
    %v407 = vpack.c.b16 %v357, %v355
    %v408 = vpack.c.b16 %v358, %v356
    %v409 = vpack.c.b16 %v361, %v359
    %v410 = vpack.c.b16 %v362, %v360
    %v411 = vpack.c.b16 %v365, %v363
    %v412 = vpack.c.b16 %v366, %v364
    %v413 = vpack.c.b16 %v369, %v367
    %v414 = vpack.c.b16 %v370, %v368
    %v415 = vpack.c.b16 %v373, %v371
    %v416 = vpack.c.b16 %v374, %v372
    %v417 = vpack.c.b16 %v377, %v375
    %v418 = vpack.c.b16 %v378, %v376
    %v419 = vpack.c.b16 %v381, %v379
    %v420 = vpack.c.b16 %v382, %v380
    %v421 = vpack.c.b16 %v385, %v383
    %v422 = vpack.c.b16 %v386, %v384
    %v423 = vpack.c.b16 %v389, %v387
    %v424 = vpack.c.b16 %v390, %v388
    %v425 = vpack.c.b16 %v393, %v391
    %v426 = vpack.c.b16 %v394, %v392
    %459 = vmatprep.subr.bf16.mxu0 %v396
    %460 = vmatpush1.bf16.msra.mxu0 %v395
    %461 = vmatprep.subr.bf16.mxu0 %v398
    %462 = vmatpush1.bf16.msra.mxu0 %v397
    %463 = vmatprep.subr.bf16.mxu0 %v400
    %464 = vmatpush1.bf16.msra.mxu0 %v399
    %465 = vmatprep.subr.bf16.mxu0 %v402
    %466 = vmatpush1.bf16.msra.mxu0 %v401
    %467 = vmatprep.subr.bf16.mxu0 %v404
    %468 = vmatpush1.bf16.msra.mxu0 %v403
    %469 = vmatprep.subr.bf16.mxu0 %v406
    %470 = vmatpush1.bf16.msra.mxu0 %v405
    %471 = vmatprep.subr.bf16.mxu0 %v408
    %472 = vmatpush1.bf16.msra.mxu0 %v407
    %473 = vmatprep.subr.bf16.mxu0 %v410
    %474 = vmatpush1.bf16.msra.mxu0 %v409
    %475 = vmatprep.subr.bf16.mxu0 %v412
    %476 = vmatpush1.bf16.msra.mxu0 %v411
    %477 = vmatprep.subr.bf16.mxu0 %v414
    %478 = vmatpush1.bf16.msra.mxu0 %v413
    %479 = vmatprep.subr.bf16.mxu0 %v416
    %480 = vmatpush1.bf16.msra.mxu0 %v415
    %481 = vmatprep.subr.bf16.mxu0 %v418
    %482 = vmatpush1.bf16.msra.mxu0 %v417
    %483 = vmatprep.subr.bf16.mxu0 %v420
    %484 = vmatpush1.bf16.msra.mxu0 %v419
    %485 = vmatprep.subr.bf16.mxu0 %v422
    %486 = vmatpush1.bf16.msra.mxu0 %v421
    %487 = vmatprep.subr.bf16.mxu0 %v424
    %488 = vmatpush1.bf16.msra.mxu0 %v423
    %489 = vmatprep.subr.bf16.mxu0 %v426
    %490 = vmatpush1.bf16.msra.mxu0 %v425
    %491 = vmatprep.mubr.bf16.mxu0 %v254
    %492 = vmatmul.mubr.bf16.gmra.mrb[0].mxu0 %v253
    %v493 = vpop.f32.mrb[0].mxu0
    %v494 = vadd.f32 %v292, %v493
    %v495 = vpop.f32.mrb[0].mxu0
    %v496 = vadd.f32 %v296, %v495
    %v497 = vpop.f32.mrb[0].mxu0
    %v498 = vpop.f32.mrb[0].mxu0
    %499 = vdwg.mxu0
    %v500 = vmax.f32 %v494, 0.0
    %v501 = vmax.f32 %v496, 0.0
    %v502 = vpack.c.bf16 %v500, %v500
    %v503 = vpack.c.bf16 %v501, %v501
    %v504 = vld [vmem:[#allocation5 + $0x14] sm:$0xf]
    %v505 = vld [vmem:[#allocation5 + $0x30] sm:$0xf]
    %v506 = vld [vmem:[#allocation5 + $0x4c] sm:$0xf]
    %v507 = vld [vmem:[#allocation5 + $0x68] sm:$0xf]
    %v508 = vld [vmem:[#allocation5 + $0x84] sm:$0xf]
    %v509 = vld [vmem:[#allocation5 + $0xa0] sm:$0xf]
    %v510 = vld [vmem:[#allocation5 + $0xbc] sm:$0xf]
    %v511 = vld [vmem:[#allocation5 + $0xd8] sm:$0xf]
    %v512 = vld [vmem:[#allocation5 + $0xf4] sm:$0xf]
    %v513 = vld [vmem:[#allocation5 + $0x110] sm:$0xf]
    %v514 = vld [vmem:[#allocation5 + $0x12c] sm:$0xf]
    %v515 = vld [vmem:[#allocation5 + $0x148] sm:$0xf]
    %v516 = vld [vmem:[#allocation5 + $0x164] sm:$0xf]
    %v517 = vld [vmem:[#allocation5 + $0x180] sm:$0xf]
    %v518 = vld [vmem:[#allocation5 + $0x19c] sm:$0xf]
    %v519 = vld [vmem:[#allocation5 + $0x1b8] sm:$0xf]
    %v520 = vld [vmem:[#allocation5 + $0x1d4] sm:$0xf]
    %v521 = vld [vmem:[#allocation5 + $0x1f0] sm:$0xf]
    %v522 = vld [vmem:[#allocation5 + $0x20c] sm:$0xf]
    %v523 = vld [vmem:[#allocation5 + $0x228] sm:$0xf]
    %v524 = vld [vmem:[#allocation5 + $0x244] sm:$0xf]
    %v525 = vld [vmem:[#allocation5 + $0x260] sm:$0xf]
    %v526 = vld [vmem:[#allocation5 + $0x27c] sm:$0xf]
    %v527 = vld [vmem:[#allocation5 + $0x298] sm:$0xf]
    %v528 = vld [vmem:[#allocation5 + $0x2b4] sm:$0xf]
    %v529 = vld [vmem:[#allocation5 + $0x2d0] sm:$0xf]
    %v530 = vld [vmem:[#allocation5 + $0x2ec] sm:$0xf]
    %v531 = vld [vmem:[#allocation5 + $0x308] sm:$0xf]
    %v532 = vld [vmem:[#allocation5 + $0x324] sm:$0xf]
    %v533 = vld [vmem:[#allocation5 + $0x340] sm:$0xf]
    %v534 = vld [vmem:[#allocation5 + $0x35c] sm:$0xf]
    %v535 = vld [vmem:[#allocation5 + $0x378] sm:$0xf]
    %v536 = vld [vmem:[%s2 + $0x5] sm:$0x1]
    %v538 = vlaneseq
    %v539 = vshrl.u32 %v538, 7
    %v540 = vsub.s32 0, %v539
    %v541 = vrot.slane %v536, %v540
    %v575 = vunpack.c.l.b16 %v504
    %v576 = vunpack.c.l.b16 %v505
    %v577 = vunpack.c.l.b16 %v506
    %v578 = vunpack.c.l.b16 %v507
    %v579 = vunpack.c.l.b16 %v508
    %v580 = vunpack.c.l.b16 %v509
    %v581 = vunpack.c.l.b16 %v510
    %v582 = vunpack.c.l.b16 %v511
    %v583 = vunpack.c.l.b16 %v512
    %v584 = vunpack.c.l.b16 %v513
    %v585 = vunpack.c.l.b16 %v514
    %v586 = vunpack.c.l.b16 %v515
    %v587 = vunpack.c.l.b16 %v516
    %v588 = vunpack.c.l.b16 %v517
    %v589 = vunpack.c.l.b16 %v518
    %v590 = vunpack.c.l.b16 %v519
    %v591 = vunpack.c.l.b16 %v520
    %v592 = vunpack.c.l.b16 %v521
    %v593 = vunpack.c.l.b16 %v522
    %v594 = vunpack.c.l.b16 %v523
    %v595 = vunpack.c.l.b16 %v524
    %v596 = vunpack.c.l.b16 %v525
    %v597 = vunpack.c.l.b16 %v526
    %v598 = vunpack.c.l.b16 %v527
    %v599 = vunpack.c.l.b16 %v528
    %v600 = vunpack.c.l.b16 %v529
    %v601 = vunpack.c.l.b16 %v530
    %v602 = vunpack.c.l.b16 %v531
    %v603 = vunpack.c.l.b16 %v532
    %v604 = vunpack.c.l.b16 %v533
    %v605 = vunpack.c.l.b16 %v534
    %v606 = vunpack.c.l.b16 %v535
    %v607 = vpack.c.b16 %v576, %v575
    %v608 = vpack.c.b16 %v578, %v577
    %v609 = vpack.c.b16 %v580, %v579
    %v610 = vpack.c.b16 %v582, %v581
    %v611 = vpack.c.b16 %v584, %v583
    %v612 = vpack.c.b16 %v586, %v585
    %v613 = vpack.c.b16 %v588, %v587
    %v614 = vpack.c.b16 %v590, %v589
    %v615 = vpack.c.b16 %v592, %v591
    %v616 = vpack.c.b16 %v594, %v593
    %v617 = vpack.c.b16 %v596, %v595
    %v618 = vpack.c.b16 %v598, %v597
    %v619 = vpack.c.b16 %v600, %v599
    %v620 = vpack.c.b16 %v602, %v601
    %v621 = vpack.c.b16 %v604, %v603
    %v622 = vpack.c.b16 %v606, %v605
    %639 = vmatprep.subr.bf16.mxu0 0
    %640 = vmatpush1.bf16.msra.mxu0 %v607
    %641 = vmatprep.subr.bf16.mxu0 0
    %642 = vmatpush1.bf16.msra.mxu0 %v608
    %643 = vmatprep.subr.bf16.mxu0 0
    %644 = vmatpush1.bf16.msra.mxu0 %v609
    %645 = vmatprep.subr.bf16.mxu0 0
    %646 = vmatpush1.bf16.msra.mxu0 %v610
    %647 = vmatprep.subr.bf16.mxu0 0
    %648 = vmatpush1.bf16.msra.mxu0 %v611
    %649 = vmatprep.subr.bf16.mxu0 0
    %650 = vmatpush1.bf16.msra.mxu0 %v612
    %651 = vmatprep.subr.bf16.mxu0 0
    %652 = vmatpush1.bf16.msra.mxu0 %v613
    %653 = vmatprep.subr.bf16.mxu0 0
    %654 = vmatpush1.bf16.msra.mxu0 %v614
    %655 = vmatprep.subr.bf16.mxu0 0
    %656 = vmatpush1.bf16.msra.mxu0 %v615
    %657 = vmatprep.subr.bf16.mxu0 0
    %658 = vmatpush1.bf16.msra.mxu0 %v616
    %659 = vmatprep.subr.bf16.mxu0 0
    %660 = vmatpush1.bf16.msra.mxu0 %v617
    %661 = vmatprep.subr.bf16.mxu0 0
    %662 = vmatpush1.bf16.msra.mxu0 %v618
    %663 = vmatprep.subr.bf16.mxu0 0
    %664 = vmatpush1.bf16.msra.mxu0 %v619
    %665 = vmatprep.subr.bf16.mxu0 0
    %666 = vmatpush1.bf16.msra.mxu0 %v620
    %667 = vmatprep.subr.bf16.mxu0 0
    %668 = vmatpush1.bf16.msra.mxu0 %v621
    %669 = vmatprep.subr.bf16.mxu0 0
    %670 = vmatpush1.bf16.msra.mxu0 %v622
    %671 = vmatprep.mubr.bf16.mxu0 %v503
    %672 = vmatmul.mubr.bf16.gmra.mrb[0].mxu0 %v502
    %v673 = vpop.f32.mrb[0].mxu0
    %v674 = vadd.f32 %v541, %v673
    %v675 = vpop.f32.mrb[0].mxu0
    %v676 = vpop.f32.mrb[0].mxu0
    %v677 = vpop.f32.mrb[0].mxu0
    %678 = vdwg.mxu0
    %v679 = vmax.f32 %v674, 0.0
    %v680 = vpack.c.bf16 %v679, %v679
    %v681 = vld [vmem:[#allocation5 + $0x18] sm:$0xf]
    %v682 = vld [vmem:[#allocation5 + $0x34] sm:$0xf]
    %v683 = vld [vmem:[#allocation5 + $0x50] sm:$0xf]
    %v684 = vld [vmem:[#allocation5 + $0x6c] sm:$0xf]
    %v685 = vld [vmem:[#allocation5 + $0x88] sm:$0xf]
    %v686 = vld [vmem:[#allocation5 + $0xa4] sm:$0xf]
    %v687 = vld [vmem:[#allocation5 + $0xc0] sm:$0xf]
    %v688 = vld [vmem:[#allocation5 + $0xdc] sm:$0xf]
    %v689 = vld [vmem:[#allocation5 + $0xf8] sm:$0xf]
    %v690 = vld [vmem:[#allocation5 + $0x114] sm:$0xf]
    %v691 = vld [vmem:[#allocation5 + $0x130] sm:$0xf]
    %v692 = vld [vmem:[#allocation5 + $0x14c] sm:$0xf]
    %v693 = vld [vmem:[#allocation5 + $0x168] sm:$0xf]
    %v694 = vld [vmem:[#allocation5 + $0x184] sm:$0xf]
    %v695 = vld [vmem:[#allocation5 + $0x1a0] sm:$0xf]
    %v696 = vld [vmem:[#allocation5 + $0x1bc] sm:$0xf]
    %v697 = vld [vmem:[%s2 + $0x6] sm:$0x1]
    %v699 = vlaneseq
    %v700 = vshrl.u32 %v699, 7
    %v701 = vsub.s32 0, %v700
    %v702 = vrot.slane %v697, %v701
    %v720 = vunpack.c.l.b16 %v681
    %v721 = vunpack.c.l.b16 %v682
    %v722 = vunpack.c.l.b16 %v683
    %v723 = vunpack.c.l.b16 %v684
    %v724 = vunpack.c.l.b16 %v685
    %v725 = vunpack.c.l.b16 %v686
    %v726 = vunpack.c.l.b16 %v687
    %v727 = vunpack.c.l.b16 %v688
    %v728 = vunpack.c.l.b16 %v689
    %v729 = vunpack.c.l.b16 %v690
    %v730 = vunpack.c.l.b16 %v691
    %v731 = vunpack.c.l.b16 %v692
    %v732 = vunpack.c.l.b16 %v693
    %v733 = vunpack.c.l.b16 %v694
    %v734 = vunpack.c.l.b16 %v695
    %v735 = vunpack.c.l.b16 %v696
    %v736 = vpack.c.b16 %v721, %v720
    %v737 = vpack.c.b16 %v723, %v722
    %v738 = vpack.c.b16 %v725, %v724
    %v739 = vpack.c.b16 %v727, %v726
    %v740 = vpack.c.b16 %v729, %v728
    %v741 = vpack.c.b16 %v731, %v730
    %v742 = vpack.c.b16 %v733, %v732
    %v743 = vpack.c.b16 %v735, %v734
    %752 = vmatprep.subr.bf16.mxu0 0
    %753 = vmatpush1.bf16.msra.mxu0 %v736
    %754 = vmatprep.subr.bf16.mxu0 0
    %755 = vmatpush1.bf16.msra.mxu0 %v737
    %756 = vmatprep.subr.bf16.mxu0 0
    %757 = vmatpush1.bf16.msra.mxu0 %v738
    %758 = vmatprep.subr.bf16.mxu0 0
    %759 = vmatpush1.bf16.msra.mxu0 %v739
    %760 = vmatprep.subr.bf16.mxu0 0
    %761 = vmatpush1.bf16.msra.mxu0 %v740
    %762 = vmatprep.subr.bf16.mxu0 0
    %763 = vmatpush1.bf16.msra.mxu0 %v741
    %764 = vmatprep.subr.bf16.mxu0 0
    %765 = vmatpush1.bf16.msra.mxu0 %v742
    %766 = vmatprep.subr.bf16.mxu0 0
    %767 = vmatpush1.bf16.msra.mxu0 %v743
    %768 = vmatprep.subr.bf16.mxu0 0
    %769 = vmatpush1.bf16.msra.mxu0 0
    %770 = vmatprep.subr.bf16.mxu0 0
    %771 = vmatpush1.bf16.msra.mxu0 0
    %772 = vmatprep.subr.bf16.mxu0 0
    %773 = vmatpush1.bf16.msra.mxu0 0
    %774 = vmatprep.subr.bf16.mxu0 0
    %775 = vmatpush1.bf16.msra.mxu0 0
    %776 = vmatprep.subr.bf16.mxu0 0
    %777 = vmatpush1.bf16.msra.mxu0 0
    %778 = vmatprep.subr.bf16.mxu0 0
    %779 = vmatpush1.bf16.msra.mxu0 0
    %780 = vmatprep.subr.bf16.mxu0 0
    %781 = vmatpush1.bf16.msra.mxu0 0
    %782 = vmatprep.subr.bf16.mxu0 0
    %783 = vmatpush1.bf16.msra.mxu0 0
    %784 = vmatprep.mubr.bf16.mxu0 0
    %785 = vmatmul.mubr.bf16.gmra.mrb[0].mxu0 %v680
    %v786 = vpop.f32.mrb[0].mxu0
    %v787 = vadd.f32 %v702, %v786
    %v788 = vpop.f32.mrb[0].mxu0
    %v789 = vpop.f32.mrb[0].mxu0
    %v790 = vpop.f32.mrb[0].mxu0
    %791 = vdwg.mxu0
    %792 = vst [vmem:[#allocation7] sm:$0xff] %v787
    // Predicated region
    $region22: #{tpu_custom_call.1} parent=1 // pred_check
      _
    $region23: #{tpu_custom_call.1} parent=1 // pred_check_branch
      %794 = sbr.rel (0) target = $region25
    $region24: #{tpu_custom_call.1} parent=1 // pred_region
      %s796 = ssub.s32 128, 128
      %797 = vsyncadd [#allocation4], %s796
      %s799 = sshll.u32 [#allocation7], 4
      %s800 = int_to_ptr.vmem [resolvable:$true] %s799
      %802 = dma.vmem_to_hbm [thread:$0]  %s800, 128, %s3, [#allocation4]
    $region25: #{tpu_custom_call.1} parent=1 // pred_fallthru
      _
    // Predicated region
    $region26: #{tpu_custom_call.1} parent=1 // pred_check
      _
    $region27: #{tpu_custom_call.1} parent=1 // pred_check_branch
      %804 = sbr.rel (0) target = $region29
    $region28: #{tpu_custom_call.1} parent=1 // pred_region
      %805 = dma.done [#allocation4], 128
    $region29: #{tpu_custom_call.1} parent=1 // pred_fallthru
      _
    %806 = vsyncpa [#allocation3], 1
    %807 = vsyncpa [#allocation6], 1
    %808 = vsyncpa [#allocation4], 1

</llo_original>
